<compile_context>
chip_gen: v7x
topology: tpu7x:2x2x1
jax: 0.10.0
libtpu: 0.0.40
codegen_flags: <defaults>
</compile_context>

<pallas_src>
import functools

import jax
import jax.numpy as jnp
from jax.experimental import pallas as pl
from jax.experimental.pallas import tpu as pltpu

_LANE = 128
_SUBLANE = 8
_MIB = 1 << 20


def _cdiv(a, b):
    return -(-a // b)


def _round_up(x, m):
    return _cdiv(x, m) * m


def _vmem_limit_bytes():
    """Per-generation scoped-VMEM limit (64 MiB v7x vs 128 MiB v5e/v6e)."""
    cap = 64 * _MIB  # conservative default: v7x per-core VMEM
    try:
        info = pltpu.get_tpu_info()
        cap = int(getattr(info, "vmem_capacity_bytes", cap) or cap)
    except Exception:
        pass
    # Leave headroom for compiler-internal scratch / semaphores / pipelining.
    return max(32 * _MIB, min(int(cap * 0.70), cap - 16 * _MIB))


def _choose_layout(d_in, d_out, pool):
    """Decide (at parameter-prep time) between the fused and the tiled path."""
    d_out_p = _round_up(d_out, _LANE)
    vmem_limit = _vmem_limit_bytes()
    buf_budget = int(vmem_limit * 0.6)  # budget for explicit (double) buffers
    n_fused = pool * d_out_p
    # Fused-path cost: resident bf16 weight (assume double-buffered) + bias,
    # plus per-row x/out buffers and the f32 matmul result, at tm >= 128.
    w_resident = 2 * d_in * n_fused * 2 + 2 * n_fused * 4
    per_row = (2 * d_in * 4           # x tile (assume f32, double-buffered)
               + 2 * d_out_p * 4      # out tile
               + n_fused * 4          # f32 matmul result y
               + d_out_p * 4)         # running max
    fused = (w_resident + 128 * per_row) <= buf_budget
    return dict(fused=fused, d_out_p=d_out_p,
                vmem_limit=vmem_limit, buf_budget=buf_budget)


def prepare_maxout_params(weight, bias, d_out, pool, *, force_tiled=False):
    """One-time re-order/pad of nn.Linear params (hoisted off the forward path).

    PyTorch: linear output column j = o*pool + p, max taken over p.
    """
    d_in = weight.shape[-1]
    plan = _choose_layout(d_in, d_out, pool)
    d_out_p = plan["d_out_p"]
    fused = plan["fused"] and not force_tiled

    w3 = weight.reshape(d_out, pool, d_in).transpose(1, 2, 0)   # (pool, d_in, d_out)
    w3 = jnp.pad(w3, ((0, 0), (0, 0), (0, d_out_p - d_out)))    # lane-pad d_out
    b2 = jnp.pad(bias.reshape(d_out, pool).T, ((0, 0), (0, d_out_p - d_out)))

    if fused:
        # (d_in, pool*d_out_p), column = p*d_out_p + n -> one wide MXU dot;
        # the max over pool stays a pure VPU op (128-aligned column blocks).
        w = jnp.transpose(w3, (1, 0, 2)).reshape(d_in, pool * d_out_p)
        b = b2.reshape(1, pool * d_out_p)
    else:
        # pool-major (pool, d_in, d_out_p): each pool slice is an independent
        # matmul operand for the K-tiled kernel.
        w = w3
        b = b2.reshape(pool, 1, d_out_p)

    return dict(kind="fused" if fused else "tiled",
                w=w.astype(jnp.bfloat16), b=b.astype(jnp.float32),
                d_in=d_in, d_out=d_out, d_out_p=d_out_p, pool=pool,
                vmem_limit=plan["vmem_limit"], buf_budget=plan["buf_budget"])


# ----------------------------- kernels -------------------------------------


def _maxout_fused_kernel(x_ref, w_ref, b_ref, o_ref, *, pool, d_out_p):
    # x_ref: (tm, d_in) native dtype   w_ref: (d_in, pool*d_out_p) bf16
    # b_ref: (1, pool*d_out_p) f32     o_ref: (tm, d_out_p)
    x = x_ref[...].astype(jnp.bfloat16)          # in-kernel cast: no extra HBM pass
    y = jnp.dot(x, w_ref[...], preferred_element_type=jnp.float32) + b_ref[...]
    m = y[:, :d_out_p]
    for p in range(1, pool):                     # static 128-aligned lane slices
        m = jnp.maximum(m, y[:, p * d_out_p:(p + 1) * d_out_p])
    o_ref[...] = m.astype(o_ref.dtype)


def _maxout_tiled_kernel(x_ref, w_ref, b_ref, o_ref, acc_ref, *, pool):
    # x_ref: (tm, tk)  w_ref: (pool, tk, tn) bf16  b_ref: (pool, 1, tn) f32
    # o_ref: (tm, tn)  acc_ref: (pool, tm, tn) f32 (persists across k steps)
    k = pl.program_id(2)

    @pl.when(k == 0)
    def _():
        acc_ref[...] = jnp.zeros_like(acc_ref)

    x = x_ref[...].astype(jnp.bfloat16)
    for p in range(pool):                        # pool is small and static
        acc_ref[p] += jnp.dot(x, w_ref[p], preferred_element_type=jnp.float32)

    @pl.when(k == pl.num_programs(2) - 1)
    def _():
        m = acc_ref[0] + b_ref[0]
        for p in range(1, pool):
            m = jnp.maximum(m, acc_ref[p] + b_ref[p])
        o_ref[...] = m.astype(o_ref.dtype)


# ----------------------------- wrappers ------------------------------------


def _row_tile(M, tm):
    tm = max(_SUBLANE, (tm // _SUBLANE) * _SUBLANE)
    return min(tm, _round_up(M, _SUBLANE))


def _forward_fused(x2d, params, out_dtype):
    d_in, d_out_p, pool = params["d_in"], params["d_out_p"], params["pool"]
    w, b = params["w"], params["b"]
    M = x2d.shape[0]
    n_fused = pool * d_out_p
    x_bytes = x2d.dtype.itemsize
    out_bytes = jnp.dtype(out_dtype).itemsize

    # Row tile from the VMEM budget left after the resident weight/bias.
    per_row = 2 * d_in * x_bytes + 2 * d_out_p * out_bytes + n_fused * 4 + d_out_p * 4
    avail = params["buf_budget"] - 2 * w.size * 2 - 2 * b.size * 4
    tm = _row_tile(M, min(1024, max(_SUBLANE, avail // per_row)))
    # >= 2 row blocks whenever possible so both v7x TensorCores get work.
    if M > _SUBLANE and _cdiv(M, tm) < 2:
        tm = _row_tile(M, _round_up(_cdiv(M, 2), _SUBLANE))
    gi = _cdiv(M, tm)

    cost = pl.CostEstimate(
        flops=2 * M * d_in * n_fused, transcendentals=0,
        bytes_accessed=(M * d_in * x_bytes + w.size * 2 + b.size * 4
                        + M * d_out_p * out_bytes))

    return pl.pallas_call(
        functools.partial(_maxout_fused_kernel, pool=pool, d_out_p=d_out_p),
        out_shape=jax.ShapeDtypeStruct((M, d_out_p), out_dtype),
        grid=(gi,),
        in_specs=[
            pl.BlockSpec((tm, d_in), lambda i: (i, 0)),
            pl.BlockSpec((d_in, n_fused), lambda i: (0, 0)),  # constant -> 1 HBM fetch
            pl.BlockSpec((1, n_fused), lambda i: (0, 0)),
        ],
        out_specs=pl.BlockSpec((tm, d_out_p), lambda i: (i, 0)),
        compiler_params=pltpu.CompilerParams(
            dimension_semantics=("parallel",),
            vmem_limit_bytes=params["vmem_limit"]),
        cost_estimate=cost,
    )(x2d, w, b)


def _forward_tiled(x2d, params, out_dtype, tile_override=None):
    d_in, d_out_p, pool = params["d_in"], params["d_out_p"], params["pool"]
    w, b = params["w"], params["b"]
    M = x2d.shape[0]
    x_bytes = x2d.dtype.itemsize
    out_bytes = jnp.dtype(out_dtype).itemsize

    if tile_override is not None:
        tm, tn, tk = tile_override
    else:
        # K tile: a 128-multiple divisor of d_in; otherwise the full d_in.
        # TODO(synk): mask the K tail in-kernel to allow K-tiling when d_in is
        # huge but not a multiple of 128.
        tk = d_in
        if d_in % _LANE == 0:
            for cand in (512, 384, 256, _LANE):
                if d_in % cand == 0:
                    tk = cand
                    break
        # N tile: largest 128-multiple divisor of d_out_p <= 512.
        tn = _LANE
        for cand in range(min(d_out_p, 512), _LANE - 1, -_LANE):
            if d_out_p % cand == 0:
                tn = cand
                break
        # M tile from the remaining budget (weight/bias blocks + acc scratch).
        fixed = 2 * pool * tk * tn * 2 + 2 * pool * tn * 4
        per_row = 2 * tk * x_bytes + 2 * tn * out_bytes + pool * tn * 4 + tn * 4
        tm = min(512, max(_SUBLANE, (params["buf_budget"] - fixed) // per_row))
    tm = _row_tile(M, tm)

    gi, gj, gk = _cdiv(M, tm), d_out_p // tn, d_in // tk
    if gi * gj < 2 and M > _SUBLANE:       # keep both v7x TensorCores busy
        tm = _row_tile(M, _round_up(_cdiv(M, 2), _SUBLANE))
        gi = _cdiv(M, tm)

    # Grid-axis order: re-fetch the smaller operand (only matters when gk == 1;
    # with gk > 1 both orders stream both operands).
    w_total = w.size * w.dtype.itemsize
    x_total = M * d_in * x_bytes
    swap = (gi - 1) * w_total > (gj - 1) * x_total
    if swap:
        grid = (gj, gi, gk)
        x_map = lambda j, i, k: (i, k)
        w_map = lambda j, i, k: (0, k, j)
        b_map = lambda j, i, k: (0, 0, j)
        o_map = lambda j, i, k: (i, j)
    else:
        grid = (gi, gj, gk)
        x_map = lambda i, j, k: (i, k)
        w_map = lambda i, j, k: (0, k, j)
        b_map = lambda i, j, k: (0, 0, j)
        o_map = lambda i, j, k: (i, j)

    x_refetch = 1 if (gk == 1 and not swap) else gj
    w_refetch = 1 if (gk == 1 and swap) else gi
    cost = pl.CostEstimate(
        flops=2 * M * d_in * pool * d_out_p, transcendentals=0,
        bytes_accessed=(x_refetch * x_total + w_refetch * w_total
                        + b.size * 4 + M * d_out_p * out_bytes))

    return pl.pallas_call(
        functools.partial(_maxout_tiled_kernel, pool=pool),
        out_shape=jax.ShapeDtypeStruct((M, d_out_p), out_dtype),
        grid=grid,
        in_specs=[
            pl.BlockSpec((tm, tk), x_map),
            pl.BlockSpec((pool, tk, tn), w_map),
            pl.BlockSpec((pool, 1, tn), b_map),
        ],
        out_specs=pl.BlockSpec((tm, tn), o_map),
        scratch_shapes=[pltpu.VMEM((pool, tm, tn), jnp.float32)],
        compiler_params=pltpu.CompilerParams(
            dimension_semantics=("parallel", "parallel", "arbitrary"),
            vmem_limit_bytes=params["vmem_limit"]),
        cost_estimate=cost,
    )(x2d, w, b)


def maxout_forward(x, params, *, tile_override=None):
    """x: (..., d_in) -> (..., d_out); matches Maxout.forward()."""
    d_in, d_out, d_out_p = params["d_in"], params["d_out"], params["d_out_p"]
    assert x.shape[-1] == d_in
    lead = x.shape[:-1]
    x2d = x.reshape(-1, d_in)
    M = x2d.shape[0]
    if M == 0:
        return jnp.zeros((*lead, d_out), x.dtype)

    if params["kind"] == "fused":
        out = _forward_fused(x2d, params, x.dtype)
    else:
        out = _forward_tiled(x2d, params, x.dtype, tile_override)

    if d_out_p != d_out:
        # TODO(synk): let downstream consumers take the lane-padded (M, d_out_p)
        # buffer directly to avoid this extra output pass.
        out = out[:, :d_out]
    return out.reshape(*lead, d_out)


# ------------------------------- test ---------------------------------------


if __name__ == "__main__":
    def reference(x, weight, bias, d_out, pool):
        y = x @ weight.T + bias
        y = y.reshape(*x.shape[:-1], d_out, pool)
        return jnp.max(y, axis=-1)

    def run_case(seed, lead, d_in, d_out, pool, force_tiled=False, tiles=None):
        kx, kw, kb = jax.random.split(jax.random.PRNGKey(seed), 3)
        weight = jax.random.normal(kw, (d_out * pool, d_in), jnp.float32)
        weight = weight * (d_in ** -0.5)
        bias = jax.random.normal(kb, (d_out * pool,), jnp.float32) * 0.1
        x = jax.random.normal(kx, (*lead, d_in), jnp.float32)

        params = prepare_maxout_params(weight, bias, d_out, pool,
                                       force_tiled=force_tiled)
        out = jax.block_until_ready(
            maxout_forward(x, params, tile_override=tiles))
        ref = reference(x, weight, bias, d_out, pool)
        assert out.shape == ref.shape, (out.shape, ref.shape)
        # bf16 operands with f32 accumulation -> slightly loose tolerance.
        assert jnp.allclose(out, ref, atol=3e-2, rtol=3e-2), \
            float(jnp.max(jnp.abs(out - ref)))

    # Case 1: module-sized shapes Maxout(32, 16, 4) -> fused single-dot path.
    run_case(0, (2, 8), d_in=32, d_out=16, pool=4)
    # Case 2: exercise the K/N-tiled path (multi-step i/j/k grid, ragged M).
    run_case(1, (3, 70), d_in=512, d_out=384, pool=2,
             force_tiled=True, tiles=(128, 128, 128))

    print("KERNEL_OK")
</pallas_src>

<mosaic_0001>
module attributes {stable_mosaic.version = 11 : i64} {
  func.func @_maxout_fused_kernel(%arg0: i32, %arg1: memref<8x32xf32, #tpu.memory_space<vmem>>, %arg2: memref<32x512xbf16, #tpu.memory_space<vmem>>, %arg3: memref<1x512xf32, #tpu.memory_space<vmem>>, %arg4: memref<8x128xf32, #tpu.memory_space<vmem>>) attributes {dimension_semantics = [#tpu.dimension_semantics<parallel>], iteration_bounds = array<i64: 2>, scalar_prefetch = 0 : i64, scratch_operands = 0 : i64, tpu.core_type = #tpu.core_type<tc>, window_params = [{transform_indices = @transform_0, window_bounds = array<i64: 8, 32>}, {pipeline_mode = #tpu.pipeline_mode<synchronous>, transform_indices = @transform_1, window_bounds = array<i64: 32, 512>}, {pipeline_mode = #tpu.pipeline_mode<synchronous>, transform_indices = @transform_2, window_bounds = array<i64: 1, 512>}, {transform_indices = @transform_3, window_bounds = array<i64: 8, 128>}]} {
    %c0 = arith.constant 0 : index
    %c0_0 = arith.constant 0 : index
    %0 = vector.load %arg1[%c0, %c0_0] : memref<8x32xf32, #tpu.memory_space<vmem>>, vector<8x32xf32>
    %1 = arith.truncf %0 : vector<8x32xf32> to vector<8x32xbf16>
    %c0_1 = arith.constant 0 : index
    %c0_2 = arith.constant 0 : index
    %2 = vector.load %arg2[%c0_1, %c0_2] : memref<32x512xbf16, #tpu.memory_space<vmem>>, vector<32x512xbf16>
    %cst = arith.constant dense<0.000000e+00> : vector<8x512xf32>
    %3 = tpu.matmul %1, %2, %cst {dimension_numbers = #tpu.dot_dimension_numbers<[1], [0], [0], [1], [0, 0, 1, 1], [], []>} : vector<8x32xbf16>, vector<32x512xbf16>, vector<8x512xf32> -> vector<8x512xf32>
    %c0_3 = arith.constant 0 : index
    %c0_4 = arith.constant 0 : index
    %4 = vector.load %arg3[%c0_3, %c0_4] : memref<1x512xf32, #tpu.memory_space<vmem>>, vector<1x512xf32>
    %5 = vector.broadcast %4 : vector<1x512xf32> to vector<8x512xf32>
    %6 = arith.addf %3, %5 : vector<8x512xf32>
    %7 = vector.extract_strided_slice %6 {offsets = [0, 0], sizes = [8, 128], strides = [1, 1]} : vector<8x512xf32> to vector<8x128xf32>
    %8 = vector.extract_strided_slice %6 {offsets = [0, 128], sizes = [8, 128], strides = [1, 1]} : vector<8x512xf32> to vector<8x128xf32>
    %9 = arith.maximumf %7, %8 : vector<8x128xf32>
    %10 = vector.extract_strided_slice %6 {offsets = [0, 256], sizes = [8, 128], strides = [1, 1]} : vector<8x512xf32> to vector<8x128xf32>
    %11 = arith.maximumf %9, %10 : vector<8x128xf32>
    %12 = vector.extract_strided_slice %6 {offsets = [0, 384], sizes = [8, 128], strides = [1, 1]} : vector<8x512xf32> to vector<8x128xf32>
    %13 = arith.maximumf %11, %12 : vector<8x128xf32>
    %c0_5 = arith.constant 0 : index
    %c0_6 = arith.constant 0 : index
    %14 = vector.load %arg4[%c0_5, %c0_6] : memref<8x128xf32, #tpu.memory_space<vmem>>, vector<8x128xf32>
    tpu.vector_store %arg4[%c0_5, %c0_6], %13 {strides = array<i32>} : memref<8x128xf32, #tpu.memory_space<vmem>>, vector<8x128xf32>,
    return
  }
  func.func @transform_0(%arg0: i32) -> (i32, i32) {
    %c0_i32 = arith.constant 0 : i32
    %c0_i32_0 = arith.constant 0 : i32
    return %arg0, %c0_i32 : i32, i32
  }
  func.func @transform_1(%arg0: i32) -> (i32, i32) {
    %c0_i32 = arith.constant 0 : i32
    %c0_i32_0 = arith.constant 0 : i32
    %c0_i32_1 = arith.constant 0 : i32
    return %c0_i32, %c0_i32_0 : i32, i32
  }
  func.func @transform_2(%arg0: i32) -> (i32, i32) {
    %c0_i32 = arith.constant 0 : i32
    %c0_i32_0 = arith.constant 0 : i32
    %c0_i32_1 = arith.constant 0 : i32
    return %c0_i32, %c0_i32_0 : i32, i32
  }
  func.func @transform_3(%arg0: i32) -> (i32, i32) {
    %c0_i32 = arith.constant 0 : i32
    %c0_i32_0 = arith.constant 0 : i32
    return %arg0, %c0_i32 : i32, i32
  }
}

</mosaic_0001>

<llo_original>
// kernel: tpu_custom_call.1
$region0: #{tpu_custom_call.1}
  #allocation0 [shape = 'u32[]', space=smem, size = 0x4, offset = 0x4, fixed_abs, tag = 'smem constant byte address 0x4 - core index']
  #allocation1 [shape = 'u32[144,128]{1,0:T(1,128)}', space=vmem, size = 0x12000, scoped, tag = 'internal scratch']
  %s0 = inlined_call_operand.hbm [shape: f32[16,32], index: 0, kind: input, shape index: {}]
  %s1 = inlined_call_operand.hbm [shape: bf16[32,512], index: 1, kind: input, shape index: {}]
  %s2 = inlined_call_operand.vmem [shape: f32[1,512], index: 2, kind: input, shape index: {}]
  %s3 = inlined_call_operand.hbm [shape: f32[16,128], index: 3, kind: output, shape index: {}]
  %s4 = sld [smem:[#allocation0]]
  $region53: #{tpu_custom_call.1} parent=0
    _
  %s6 = ssub.s32 1, %s4
  %s7 = scalar_select 0, %s6, %s4
  $region1: #{tpu_custom_call.1} parent=0
    #allocation2 [shape = 'u8[8192]{0}', space=vmem, size = 0x2000, scoped, tag = 'input window, operand 0']
    #allocation3 [shape = 's32[2]{0}', space=sflag, size = 0x8, scoped, tag = 'scoped memory for tpu_custom_call.1']
    #allocation4 [shape = 's32[2]{0}', space=sflag, size = 0x8, scoped, tag = 'scoped memory for tpu_custom_call.1']
    #allocation5 [shape = 'u8[32768]{0}', space=vmem, size = 0x8000, scoped, tag = 'input window, operand 1, single buffered']
    #allocation6 [shape = 's32[1]{0}', space=sflag, size = 0x4, scoped, tag = 'scoped memory for tpu_custom_call.1']
    #allocation7 [shape = 'u8[8192]{0}', space=vmem, size = 0x2000, scoped, tag = 'output window, operand 0']
    %8 = vsyncpa [#allocation3], 0
    %s9 = scalar_lea.sflag [#allocation3], 1
    %10 = vsyncpa %s9, 0
    %11 = vsyncpa [#allocation6], 0
    %12 = vsyncpa [#allocation4], 0
    %s13 = scalar_lea.sflag [#allocation4], 1
    %14 = vsyncpa %s13, 0
    loop: start=0, step=1, limit=4
    $region2: #{tpu_custom_call.1} parent=1 // loop_pre_header
      _
    $region3: #{tpu_custom_call.1} parent=1 // loop_header
      %s16 = sphi 0, %s20
      %p17 = scmp.ge.s32.totalorder %s16, 4
      %s26 = sphi 0, %s28
      %s29 = sphi 0, %s26
      %s30 = sphi 0, %s29
      %s46 = sphi 0, %s30
      %s50 = sphi 0, %s50
      %s52 = sphi 0, %s50
      %s53 = sphi 0, %s52
      %s67 = sphi 0, %s53
      %s71 = sphi 0, %s71
      %s73 = sphi 0, %s71
      %s74 = sphi 0, %s73
      %s88 = sphi 0, %s74
      %s94 = sphi 0, %s96
      %s97 = sphi 0, %s94
      %s98 = sphi 0, %s97
      %s114 = sphi 0, %s98
    $region4: #{tpu_custom_call.1} parent=1 // loop_header_branch
      %19 = sbr.rel (%p17) target = $region8
    $region5: #{tpu_custom_call.1} parent=1 // loop_body
      %s21 = ssub.s32 %s16, 1
      %s22 = ssub.s32 %s16, 2
      %s23 = sadd.s32 %s16, 1
      %s24 = ssub.s32 %s16, %s23
      %p25 = scmp.eq.s32.totalorder %s24, 0
      %s27 = sadd.s32 %s26, 1
      %s28 = scalar_select %p25, %s26, %s27
      %p31 = pneg %p25
      %p32 = scmp.eq.s32.totalorder %s16, 1
      %p33 = por %p31, %p32
      %p34 = scmp.ne.s32.totalorder %s26, %s29
      %p35 = scmp.eq.s32.totalorder %s16, 0
      %p36 = por %p34, %p35
      %p37 = scmp.ne.s32.totalorder %s26, %s29
      %p38 = scmp.eq.s32.totalorder %s21, 1
      %p39 = por %p37, %p38
      %p40 = scmp.ne.s32.totalorder %s29, %s30
      %p41 = scmp.eq.s32.totalorder %s21, 0
      %p42 = por %p40, %p41
      %p43 = scmp.ne.s32.totalorder %s29, %s30
      %p44 = scmp.eq.s32.totalorder %s22, 1
      %p45 = por %p43, %p44
      %p47 = scmp.ne.s32.totalorder %s30, %s46
      %p48 = scmp.eq.s32.totalorder %s22, 0
      %p49 = por %p47, %p48
      %s51 = sadd.s32 %s50, 1
      %p54 = scmp.eq.s32.totalorder %s16, 1
      %p55 = scmp.ne.s32.totalorder %s50, %s52
      %p56 = scmp.eq.s32.totalorder %s16, 0
      %p57 = por %p55, %p56
      %p58 = scmp.ne.s32.totalorder %s50, %s52
      %p59 = scmp.eq.s32.totalorder %s21, 1
      %p60 = por %p58, %p59
      %p61 = scmp.ne.s32.totalorder %s52, %s53
      %p62 = scmp.eq.s32.totalorder %s21, 0
      %p63 = por %p61, %p62
      %p64 = scmp.ne.s32.totalorder %s52, %s53
      %p65 = scmp.eq.s32.totalorder %s22, 1
      %p66 = por %p64, %p65
      %p68 = scmp.ne.s32.totalorder %s53, %s67
      %p69 = scmp.eq.s32.totalorder %s22, 0
      %p70 = por %p68, %p69
      %s72 = sadd.s32 %s71, 1
      %p75 = scmp.eq.s32.totalorder %s16, 1
      %p76 = scmp.ne.s32.totalorder %s71, %s73
      %p77 = scmp.eq.s32.totalorder %s16, 0
      %p78 = por %p76, %p77
      %p79 = scmp.ne.s32.totalorder %s71, %s73
      %p80 = scmp.eq.s32.totalorder %s21, 1
      %p81 = por %p79, %p80
      %p82 = scmp.ne.s32.totalorder %s73, %s74
      %p83 = scmp.eq.s32.totalorder %s21, 0
      %p84 = por %p82, %p83
      %p85 = scmp.ne.s32.totalorder %s73, %s74
      %p86 = scmp.eq.s32.totalorder %s22, 1
      %p87 = por %p85, %p86
      %p89 = scmp.ne.s32.totalorder %s74, %s88
      %p90 = scmp.eq.s32.totalorder %s22, 0
      %p91 = por %p89, %p90
      %s92 = ssub.s32 %s16, %s23
      %p93 = scmp.eq.s32.totalorder %s92, 0
      %s95 = sadd.s32 %s94, 1
      %s96 = scalar_select %p93, %s94, %s95
      %p99 = pneg %p93
      %p100 = scmp.eq.s32.totalorder %s16, 1
      %p101 = por %p99, %p100
      %p102 = scmp.ne.s32.totalorder %s94, %s97
      %p103 = scmp.eq.s32.totalorder %s16, 0
      %p104 = por %p102, %p103
      %p105 = scmp.ne.s32.totalorder %s94, %s97
      %p106 = scmp.eq.s32.totalorder %s21, 1
      %p107 = por %p105, %p106
      %p108 = scmp.ne.s32.totalorder %s97, %s98
      %p109 = scmp.eq.s32.totalorder %s21, 0
      %p110 = por %p108, %p109
      %p111 = scmp.ne.s32.totalorder %s97, %s98
      %p112 = scmp.eq.s32.totalorder %s22, 1
      %p113 = por %p111, %p112
      %p115 = scmp.ne.s32.totalorder %s98, %s114
      %p116 = scmp.eq.s32.totalorder %s22, 0
      %p117 = por %p115, %p116
      %p118 = scmp.le.s32.totalorder 1, %s16
      %p119 = scmp.lt.s32.totalorder %s16, 3
      %p120 = pnand %p118, %p119
      %p121 = pneg %p120
      // Predicated region
      $region9: #{tpu_custom_call.1} parent=5 // pred_check
        _
      $region10: #{tpu_custom_call.1} parent=5 // pred_check_branch
        %123 = sbr.rel (%p120) target = $region12
      $region11: #{tpu_custom_call.1} parent=5 // pred_region
        %s124 = ssub.s32 %s16, 1
        // Predicated region
        $region13: #{tpu_custom_call.1} parent=11 // pred_check
          %p125 = pneg %p63
        $region14: #{tpu_custom_call.1} parent=11 // pred_check_branch
          %127 = sbr.rel (%p125) target = $region16
        $region15: #{tpu_custom_call.1} parent=11 // pred_region
          %s129 = ssub.s32 1024, 1024
          %130 = vsyncadd [#allocation6], %s129
          %s131 = sshll.u32 [#allocation5], 4
          %s132 = int_to_ptr.vmem [resolvable:$true] %s131
          %137 = dma.hbm_to_vmem [thread:$0]  %s1, 1024, %s132, [#allocation6], 256, 256, 16
        $region16: #{tpu_custom_call.1} parent=11 // pred_fallthru
          _
        // Predicated region
        $region17: #{tpu_custom_call.1} parent=11 // pred_check
          %p138 = pneg %p84
        $region18: #{tpu_custom_call.1} parent=11 // pred_check_branch
          %140 = sbr.rel (%p138) target = $region20
        $region19: #{tpu_custom_call.1} parent=11 // pred_region
          _
        $region20: #{tpu_custom_call.1} parent=11 // pred_fallthru
          _
      $region12: #{tpu_custom_call.1} parent=5 // pred_fallthru
        _
      %p141 = scmp.lt.s32.totalorder %s16, 2
      // Predicated region
      $region21: #{tpu_custom_call.1} parent=5 // pred_check
        %p142 = pneg %p141
      $region22: #{tpu_custom_call.1} parent=5 // pred_check_branch
        %144 = sbr.rel (%p142) target = $region24
      $region23: #{tpu_custom_call.1} parent=5 // pred_region
        // Predicated region
        $region25: #{tpu_custom_call.1} parent=23 // pred_check
          %p145 = pneg %p36
        $region26: #{tpu_custom_call.1} parent=23 // pred_check_branch
          %147 = sbr.rel (%p145) target = $region28
        $region27: #{tpu_custom_call.1} parent=23 // pred_region
          %s148 = sand.u32 %s26, 1
          %s149 = scalar_lea.sflag [#allocation3], %s148
          %s150 = sand.u32 %s26, 1
          %s151 = smul.addr %s150, 8
          %s152 = scalar_lea.vmem [#allocation2], %s151
          %s154 = ssub.s32 128, 128
          %155 = vsyncadd %s149, %s154
          %s156 = smul.addr %s16, 128
          %s157 = scalar_lea.hbm %s0, %s156
          %s159 = sshll.u32 %s152, 4
          %s160 = int_to_ptr.vmem [resolvable:$true] %s159
          %162 = dma.hbm_to_vmem [thread:$0]  %s157, 128, %s160, %s149
        $region28: #{tpu_custom_call.1} parent=23 // pred_fallthru
          _
      $region24: #{tpu_custom_call.1} parent=5 // pred_fallthru
        _
      %p163 = scmp.le.s32.totalorder 1, %s16
      %p164 = scmp.lt.s32.totalorder %s16, 3
      %p165 = pnand %p163, %p164
      %p166 = pneg %p165
      // Predicated region
      $region29: #{tpu_custom_call.1} parent=5 // pred_check
        _
      $region30: #{tpu_custom_call.1} parent=5 // pred_check_branch
        %168 = sbr.rel (%p165) target = $region32
      $region31: #{tpu_custom_call.1} parent=5 // pred_region
        %s169 = ssub.s32 %s16, 1
        %s170 = sand.u32 %s29, 1
        %s171 = scalar_lea.sflag [#allocation3], %s170
        %s172 = sand.u32 %s29, 1
        %s173 = smul.addr %s172, 8
        %s174 = scalar_lea.vmem [#allocation2], %s173
        // Predicated region
        $region33: #{tpu_custom_call.1} parent=31 // pred_check
          %p175 = pneg %p42
        $region34: #{tpu_custom_call.1} parent=31 // pred_check_branch
          %177 = sbr.rel (%p175) target = $region36
        $region35: #{tpu_custom_call.1} parent=31 // pred_region
          %178 = dma.done %s171, 128
        $region36: #{tpu_custom_call.1} parent=31 // pred_fallthru
          _
        // Predicated region
        $region37: #{tpu_custom_call.1} parent=31 // pred_check
          %p179 = pneg %p63
        $region38: #{tpu_custom_call.1} parent=31 // pred_check_branch
          %181 = sbr.rel (%p179) target = $region40
        $region39: #{tpu_custom_call.1} parent=31 // pred_region
          %182 = dma.done [#allocation6], 1024
        $region40: #{tpu_custom_call.1} parent=31 // pred_fallthru
          _
        %s183 = sand.u32 %s29, 1
        %s184 = scalar_lea.sflag [#allocation3], %s183
        %s185 = sand.u32 %s29, 1
        %s186 = smul.addr %s185, 8
        %s187 = scalar_lea.vmem [#allocation2], %s186
        %p188 = pneg %p42
        %p189 = pneg %p39
        %p190 = pneg %p63
        %p191 = pneg %p60
        %p192 = pneg %p84
        %p193 = pneg %p81
        %p194 = pneg %p110
        %p195 = pneg %p107
        %s196 = sand.u32 %s97, 1
        %s197 = scalar_lea.sflag [#allocation4], %s196
        %s198 = sand.u32 %s97, 1
        %s199 = smul.addr %s198, 8
        %s200 = scalar_lea.vmem [#allocation7], %s199
        %v202 = vld [vmem:[%s174] sm:$0xff]
        %v203 = vpack.c.bf16 %v202, %v202
        %v204 = vld [vmem:[#allocation5] sm:$0xff]
        %v205 = vld [vmem:[#allocation5 + $0x8] sm:$0xff]
        %v206 = vld [vmem:[#allocation5 + $0x10] sm:$0xff]
        %v207 = vld [vmem:[#allocation5 + $0x18] sm:$0xff]
        %v208 = vld [vmem:[#allocation5 + $0x20] sm:$0xff]
        %v209 = vld [vmem:[#allocation5 + $0x28] sm:$0xff]
        %v210 = vld [vmem:[#allocation5 + $0x30] sm:$0xff]
        %v211 = vld [vmem:[#allocation5 + $0x38] sm:$0xff]
        %v212 = vld [vmem:[%s2] sm:$0xf]
        %v214 = vlaneseq
        %v215 = vshrl.u32 %v214, 7
        %v216 = vsub.s32 0, %v215
        %v217 = vrot.slane %v212, %v216
        %v218 = vlaneseq
        %v219 = vshrl.u32 %v218, 7
        %v220 = vsub.s32 1, %v219
        %v221 = vrot.slane %v212, %v220
        %v222 = vlaneseq
        %v223 = vshrl.u32 %v222, 7
        %v224 = vsub.s32 2, %v223
        %v225 = vrot.slane %v212, %v224
        %v226 = vlaneseq
        %v227 = vshrl.u32 %v226, 7
        %v228 = vsub.s32 3, %v227
        %v229 = vrot.slane %v212, %v228
        %v242 = vunpack.c.l.b16 %v204
        %v243 = vunpack.c.h.b16 %v204
        %v244 = vunpack.c.l.b16 %v205
        %v245 = vunpack.c.h.b16 %v205
        %v246 = vunpack.c.l.b16 %v206
        %v247 = vunpack.c.h.b16 %v206
        %v248 = vunpack.c.l.b16 %v207
        %v249 = vunpack.c.h.b16 %v207
        %v250 = vunpack.c.l.b16 %v208
        %v251 = vunpack.c.h.b16 %v208
        %v252 = vunpack.c.l.b16 %v209
        %v253 = vunpack.c.h.b16 %v209
        %v254 = vunpack.c.l.b16 %v210
        %v255 = vunpack.c.h.b16 %v210
        %v256 = vunpack.c.l.b16 %v211
        %v257 = vunpack.c.h.b16 %v211
        %v258 = vpack.c.b16 %v246, %v242
        %v259 = vpack.c.b16 %v247, %v243
        %v260 = vpack.c.b16 %v248, %v244
        %v261 = vpack.c.b16 %v249, %v245
        %v262 = vpack.c.b16 %v254, %v250
        %v263 = vpack.c.b16 %v255, %v251
        %v264 = vpack.c.b16 %v256, %v252
        %v265 = vpack.c.b16 %v257, %v253
        %vm274 = vcmask 261120
        %v276 = vsel %vm274, %v203, 0
        %278 = vmatprep.subr.bf16.mxu0 %v259
        %279 = vmatpush1.bf16.msra.mxu0 %v258
        %280 = vmatprep.subr.bf16.mxu0 %v263
        %281 = vmatpush1.bf16.msra.mxu0 %v262
        %282 = vmatprep.subr.bf16.mxu0 0
        %283 = vmatpush1.bf16.msra.mxu0 0
        %284 = vmatprep.subr.bf16.mxu0 0
        %285 = vmatpush1.bf16.msra.mxu0 0
        %286 = vmatprep.subr.bf16.mxu0 0
        %287 = vmatpush1.bf16.msra.mxu0 0
        %288 = vmatprep.subr.bf16.mxu0 0
        %289 = vmatpush1.bf16.msra.mxu0 0
        %290 = vmatprep.subr.bf16.mxu0 0
        %291 = vmatpush1.bf16.msra.mxu0 0
        %292 = vmatprep.subr.bf16.mxu0 0
        %293 = vmatpush1.bf16.msra.mxu0 0
        %294 = vmatprep.subr.bf16.mxu0 0
        %295 = vmatpush1.bf16.msra.mxu0 0
        %296 = vmatprep.subr.bf16.mxu0 0
        %297 = vmatpush1.bf16.msra.mxu0 0
        %298 = vmatprep.subr.bf16.mxu0 0
        %299 = vmatpush1.bf16.msra.mxu0 0
        %300 = vmatprep.subr.bf16.mxu0 0
        %301 = vmatpush1.bf16.msra.mxu0 0
        %302 = vmatprep.subr.bf16.mxu0 0
        %303 = vmatpush1.bf16.msra.mxu0 0
        %304 = vmatprep.subr.bf16.mxu0 0
        %305 = vmatpush1.bf16.msra.mxu0 0
        %306 = vmatprep.subr.bf16.mxu0 0
        %307 = vmatpush1.bf16.msra.mxu0 0
        %308 = vmatprep.subr.bf16.mxu0 0
        %309 = vmatpush1.bf16.msra.mxu0 0
        %310 = vmatprep.mubr.bf16.mxu0 0
        %311 = vmatmul.mubr.bf16.gmra.mrb[0].mxu0 %v276
        %v312 = vpop.f32.mrb[0].mxu0
        %v313 = vadd.f32 %v217, %v312
        %v314 = vpop.f32.mrb[0].mxu0
        %v315 = vadd.f32 %v221, %v314
        %v316 = vpop.f32.mrb[0].mxu0
        %v317 = vpop.f32.mrb[0].mxu0
        %318 = vdwg.mxu0
        %319 = vmatprep.subr.bf16.mxu0 %v261
        %320 = vmatpush1.bf16.msra.mxu0 %v260
        %321 = vmatprep.subr.bf16.mxu0 %v265
        %322 = vmatpush1.bf16.msra.mxu0 %v264
        %323 = vmatprep.subr.bf16.mxu0 0
        %324 = vmatpush1.bf16.msra.mxu0 0
        %325 = vmatprep.subr.bf16.mxu0 0
        %326 = vmatpush1.bf16.msra.mxu0 0
        %327 = vmatprep.subr.bf16.mxu0 0
        %328 = vmatpush1.bf16.msra.mxu0 0
        %329 = vmatprep.subr.bf16.mxu0 0
        %330 = vmatpush1.bf16.msra.mxu0 0
        %331 = vmatprep.subr.bf16.mxu0 0
        %332 = vmatpush1.bf16.msra.mxu0 0
        %333 = vmatprep.subr.bf16.mxu0 0
        %334 = vmatpush1.bf16.msra.mxu0 0
        %335 = vmatprep.subr.bf16.mxu0 0
        %336 = vmatpush1.bf16.msra.mxu0 0
        %337 = vmatprep.subr.bf16.mxu0 0
        %338 = vmatpush1.bf16.msra.mxu0 0
        %339 = vmatprep.subr.bf16.mxu0 0
        %340 = vmatpush1.bf16.msra.mxu0 0
        %341 = vmatprep.subr.bf16.mxu0 0
        %342 = vmatpush1.bf16.msra.mxu0 0
        %343 = vmatprep.subr.bf16.mxu0 0
        %344 = vmatpush1.bf16.msra.mxu0 0
        %345 = vmatprep.subr.bf16.mxu0 0
        %346 = vmatpush1.bf16.msra.mxu0 0
        %347 = vmatprep.subr.bf16.mxu0 0
        %348 = vmatpush1.bf16.msra.mxu0 0
        %349 = vmatprep.subr.bf16.mxu0 0
        %350 = vmatpush1.bf16.msra.mxu0 0
        %351 = vmatprep.mubr.bf16.mxu0 0
        %352 = vmatmul.mubr.bf16.gmra.mrb[0].mxu0 %v276
        %v353 = vpop.f32.mrb[0].mxu0
        %v354 = vadd.f32 %v225, %v353
        %v355 = vpop.f32.mrb[0].mxu0
        %v356 = vadd.f32 %v229, %v355
        %v357 = vpop.f32.mrb[0].mxu0
        %v358 = vpop.f32.mrb[0].mxu0
        %359 = vdwg.mxu0
        %v360 = vmax.f32 %v313, %v315
        %v361 = vmax.f32 %v360, %v354
        %v362 = vmax.f32 %v361, %v356
        %363 = vst [vmem:[%s200] sm:$0xff] %v362
        %s364 = sand.u32 %s97, 1
        %s365 = scalar_lea.sflag [#allocation4], %s364
        %s366 = sand.u32 %s97, 1
        %s367 = smul.addr %s366, 8
        %s368 = scalar_lea.vmem [#allocation7], %s367
        // Predicated region
        $region41: #{tpu_custom_call.1} parent=31 // pred_check
          %p369 = pneg %p107
        $region42: #{tpu_custom_call.1} parent=31 // pred_check_branch
          %371 = sbr.rel (%p369) target = $region44
        $region43: #{tpu_custom_call.1} parent=31 // pred_region
          %s373 = ssub.s32 128, 128
          %374 = vsyncadd %s365, %s373
          %s375 = smul.addr %s21, 128
          %s376 = scalar_lea.hbm %s3, %s375
          %s378 = sshll.u32 %s368, 4
          %s379 = int_to_ptr.vmem [resolvable:$true] %s378
          %381 = dma.vmem_to_hbm [thread:$0]  %s379, 128, %s376, %s365
        $region44: #{tpu_custom_call.1} parent=31 // pred_fallthru
          _
      $region32: #{tpu_custom_call.1} parent=5 // pred_fallthru
        _
      %p382 = scmp.le.s32.totalorder 2, %s16
      // Predicated region
      $region45: #{tpu_custom_call.1} parent=5 // pred_check
        %p383 = pneg %p382
      $region46: #{tpu_custom_call.1} parent=5 // pred_check_branch
        %385 = sbr.rel (%p383) target = $region48
      $region47: #{tpu_custom_call.1} parent=5 // pred_region
        %s386 = ssub.s32 %s16, 2
        // Predicated region
        $region49: #{tpu_custom_call.1} parent=47 // pred_check
          %p387 = pneg %p113
        $region50: #{tpu_custom_call.1} parent=47 // pred_check_branch
          %389 = sbr.rel (%p387) target = $region52
        $region51: #{tpu_custom_call.1} parent=47 // pred_region
          %s390 = sand.u32 %s98, 1
          %s391 = scalar_lea.sflag [#allocation4], %s390
          %s392 = sand.u32 %s98, 1
          %s393 = smul.addr %s392, 8
          %s394 = scalar_lea.vmem [#allocation7], %s393
          %395 = dma.done %s391, 128
        $region52: #{tpu_custom_call.1} parent=47 // pred_fallthru
          _
      $region48: #{tpu_custom_call.1} parent=5 // pred_fallthru
        _
    $region6: #{tpu_custom_call.1} parent=1 // loop_footer
      %s20 = sadd.s32 1, %s16
    $region7: #{tpu_custom_call.1} parent=1 // loop_footer_branch
      %15 = sbr.rel target = $region3
    $region8: #{tpu_custom_call.1} parent=1 // loop_exit
      _
    %396 = vsyncpa [#allocation3], 1
    %s397 = scalar_lea.sflag [#allocation3], 1
    %398 = vsyncpa %s397, 1
    %399 = vsyncpa [#allocation6], 1
    %400 = vsyncpa [#allocation4], 1
    %s401 = scalar_lea.sflag [#allocation4], 1
    %402 = vsyncpa %s401, 1

</llo_original>
